<compile_context>
chip_gen: v7x
topology: tpu7x:2x2x1
jax: 0.10.0
libtpu: 0.0.40
codegen_flags: <defaults>
</compile_context>

<pallas_src>
import functools
import math

import jax
import jax.numpy as jnp
from jax.experimental import pallas as pl
from jax.experimental.pallas import tpu as pltpu

_MIB = 1024 * 1024


# ---------------------------------------------------------------------------
# Kernels.  Q block (bt, tq, D), K/V block (bt, tk, D), O block (bt, tq, D).
# Heads are contiguous P-wide chunks of the last (lane) dim, D = H * P.
# ---------------------------------------------------------------------------
def _mha_single_tile_kernel(q_ref, k_ref, v_ref, o_ref, *, num_heads, scale,
                            approx_recip):
    """Fast path: the whole KV extent fits in one tile -> plain softmax, no
    scratch, no online-softmax machinery, one lane-dense output store."""
    D = q_ref.shape[-1]
    P = D // num_heads

    q = q_ref[...]
    if scale != 1.0:
        q = q * scale                     # scale the small Q tile, not the logits
    k = k_ref[...]
    v = v_ref[...]

    outs = []
    for h in range(num_heads):
        sl = slice(h * P, (h + 1) * P)
        # Q_h @ K_h^T: contract the LAST dim of both operands (no explicit K.T).
        s = jax.lax.dot_general(
            q[:, :, sl], k[:, :, sl],
            dimension_numbers=(((2,), (2,)), ((0,), (0,))),
            preferred_element_type=jnp.float32)          # (bt, tq, Lk) f32
        m = s.max(axis=-1, keepdims=True)
        p = jnp.exp(s - m)
        l = p.sum(axis=-1, keepdims=True)                # (bt, tq, 1)
        pv = jax.lax.dot_general(
            p.astype(v.dtype), v[:, :, sl],
            dimension_numbers=(((2,), (1,)), ((0,), (0,))),
            preferred_element_type=jnp.float32)          # (bt, tq, P) f32
        inv = pl.reciprocal(l, approx=approx_recip)      # tiny tensor; EUP when approx
        outs.append(pv * inv)

    # Single lane-dense (bt, tq, D) store.
    o_ref[...] = jnp.concatenate(outs, axis=-1).astype(o_ref.dtype)


def _mha_flash_kernel(q_ref, k_ref, v_ref, o_ref, m_sc, l_sc, acc_sc, *,
                      num_heads, scale, approx_recip):
    """General path: KV dim tiled -> flash-style online softmax with f32
    accumulator scratch.  Reduction axis (ki) is the last grid axis."""
    D = q_ref.shape[-1]
    P = D // num_heads
    ki = pl.program_id(2)

    @pl.when(ki == 0)
    def _init():
        m_sc[...] = jnp.full(m_sc.shape, -jnp.inf, dtype=m_sc.dtype)
        l_sc[...] = jnp.zeros(l_sc.shape, dtype=l_sc.dtype)
        acc_sc[...] = jnp.zeros(acc_sc.shape, dtype=acc_sc.dtype)

    q = q_ref[...]
    if scale != 1.0:
        q = q * scale
    k = k_ref[...]
    v = v_ref[...]

    for h in range(num_heads):
        sl = slice(h * P, (h + 1) * P)
        hs = slice(h, h + 1)
        s = jax.lax.dot_general(
            q[:, :, sl], k[:, :, sl],
            dimension_numbers=(((2,), (2,)), ((0,), (0,))),
            preferred_element_type=jnp.float32)          # (bt, tq, tk) f32
        m_prev = m_sc[:, :, hs]
        m_new = jnp.maximum(m_prev, s.max(axis=-1, keepdims=True))
        alpha = jnp.exp(m_prev - m_new)
        p = jnp.exp(s - m_new)
        l_sc[:, :, hs] = alpha * l_sc[:, :, hs] + p.sum(axis=-1, keepdims=True)
        pv = jax.lax.dot_general(
            p.astype(v.dtype), v[:, :, sl],
            dimension_numbers=(((2,), (1,)), ((0,), (0,))),
            preferred_element_type=jnp.float32)          # (bt, tq, P) f32
        acc_sc[:, :, sl] = alpha * acc_sc[:, :, sl] + pv
        m_sc[:, :, hs] = m_new

    @pl.when(ki == pl.num_programs(2) - 1)
    def _finalize():
        acc = acc_sc[...]
        l = l_sc[...]
        outs = []
        for h in range(num_heads):
            inv_h = pl.reciprocal(l[:, :, h:h + 1], approx=approx_recip)
            outs.append(acc[:, :, h * P:(h + 1) * P] * inv_h)
        o_ref[...] = jnp.concatenate(outs, axis=-1).astype(o_ref.dtype)


# ---------------------------------------------------------------------------
# Chip-aware planning helpers.
# ---------------------------------------------------------------------------
def _vmem_plan():
    """Returns (vmem_limit_bytes, per-grid-step block budget), chip aware."""
    cap = 64 * _MIB
    try:
        info_cap = pltpu.get_tpu_info().vmem_capacity_bytes
        if info_cap:
            cap = int(info_cap)
    except Exception:
        pass
    if cap >= 96 * _MIB:
        # 128 MiB parts (v5e / v6e): use the headroom for bigger tiles.
        return 96 * _MIB, 40 * _MIB
    # 64 MiB parts (v7x class): leave room for Pallas internal scratch and
    # the double-buffered block streams.
    return min(30 * _MIB, (cap * 3) // 8), 12 * _MIB


def _pick_seq_tile(total, target, step):
    """Largest tile <= target dividing `total`, preferring MXU-friendly
    multiples of 256 / 128, then multiples of `step`; else the full extent."""
    if total <= target:
        return total
    for quantum in (256, 128, step):
        t = (target // quantum) * quantum
        while t >= quantum:
            if total % t == 0:
                return t
            t -= quantum
    return total


# ---------------------------------------------------------------------------
# Fused multi-head attention wrapper.
#   q: (B, Lq, D), k/v: (B, Lk, D) -> (B, Lq, D).
#   Heads are D-chunks of width D // num_heads (PyTorch view semantics).
#   The (B, H, Lq, Lk) attention matrix is never materialized in HBM.
# ---------------------------------------------------------------------------
def fused_multihead_attention(q, k, v, *, num_heads, scale=1.0,
                              compute_dtype=None,
                              tq_target=1024, tk_target=1024):
    B, Lq, D = q.shape
    Bk, Lk, Dk = k.shape
    assert B == Bk and D == Dk and v.shape == k.shape
    assert D % num_heads == 0, f"{D} dim, {num_heads} heads"
    out_dtype = q.dtype

    if compute_dtype is not None and jnp.dtype(compute_dtype) != q.dtype:
        q = q.astype(compute_dtype)
        k = k.astype(compute_dtype)
        v = v.astype(compute_dtype)
    in_item = jnp.dtype(q.dtype).itemsize
    out_item = jnp.dtype(out_dtype).itemsize
    step = 16 if in_item < 4 else 8          # sublane quantum for packed dtypes
    approx_recip = in_item < 4               # exact normalization on the f32 path

    vmem_limit, budget = _vmem_plan()
    tq = _pick_seq_tile(Lq, tq_target, step)
    tk = _pick_seq_tile(Lk, tk_target, step)

    def step_bytes(bt, tq_, tk_, single):
        # 2x for double-buffered input/output block streams.
        total = 2 * bt * (tq_ * D * in_item + 2 * tk_ * D * in_item
                          + tq_ * D * out_item)
        if not single:
            # f32 acc + (lane-padded) m/l scratch.
            total += bt * tq_ * D * 4 + 2 * bt * tq_ * max(num_heads, 128) * 4
        return total

    # Single-KV-tile fast path whenever a full-Lk K/V block fits the budget
    # (always true on the inducing-point side of ISAB; usually true overall).
    single_tile = step_bytes(1, tq, Lk, True) <= budget
    if single_tile:
        tk = Lk

    q_tiles = Lq // tq
    # Batch tile: largest divisor of B fitting the VMEM budget while keeping
    # >= 2 blocks on the parallel axes (so both v7x TensorCores get work).
    bt = 1
    for cand in range(1, B + 1):
        if B % cand:
            continue
        if step_bytes(cand, tq, tk, single_tile) > budget:
            continue
        if B * q_tiles >= 2 and (B // cand) * q_tiles < 2:
            continue
        bt = cand

    cost = pl.CostEstimate(
        flops=4 * B * Lq * Lk * D,
        transcendentals=B * num_heads * Lq * Lk,
        bytes_accessed=(q.size + k.size + v.size) * in_item
                       + B * Lq * D * out_item,
    )
    common = dict(num_heads=num_heads, scale=float(scale),
                  approx_recip=approx_recip)

    if single_tile:
        kernel = functools.partial(_mha_single_tile_kernel, **common)
        return pl.pallas_call(
            kernel,
            out_shape=jax.ShapeDtypeStruct((B, Lq, D), out_dtype),
            grid_spec=pltpu.PrefetchScalarGridSpec(
                num_scalar_prefetch=0,
                grid=(B // bt, q_tiles),
                in_specs=[
                    pl.BlockSpec((bt, tq, D), lambda b, qi: (b, qi, 0)),
                    pl.BlockSpec((bt, Lk, D), lambda b, qi: (b, 0, 0)),
                    pl.BlockSpec((bt, Lk, D), lambda b, qi: (b, 0, 0)),
                ],
                out_specs=pl.BlockSpec((bt, tq, D), lambda b, qi: (b, qi, 0)),
            ),
            compiler_params=pltpu.CompilerParams(
                dimension_semantics=("parallel", "parallel"),
                vmem_limit_bytes=vmem_limit,
            ),
            cost_estimate=cost,
        )(q, k, v)

    # General flash path (Lk tiled).  If profiling ever shows exposed K/V DMA
    # on v5e, pipeline_mode=pl.Buffered(3) on the K/V specs is the knob.
    kernel = functools.partial(_mha_flash_kernel, **common)
    return pl.pallas_call(
        kernel,
        out_shape=jax.ShapeDtypeStruct((B, Lq, D), out_dtype),
        grid_spec=pltpu.PrefetchScalarGridSpec(
            num_scalar_prefetch=0,
            grid=(B // bt, q_tiles, Lk // tk),
            in_specs=[
                pl.BlockSpec((bt, tq, D), lambda b, qi, ki: (b, qi, 0)),
                pl.BlockSpec((bt, tk, D), lambda b, qi, ki: (b, ki, 0)),
                pl.BlockSpec((bt, tk, D), lambda b, qi, ki: (b, ki, 0)),
            ],
            out_specs=pl.BlockSpec((bt, tq, D), lambda b, qi, ki: (b, qi, 0)),
            scratch_shapes=[
                pltpu.VMEM((bt, tq, num_heads), jnp.float32),   # running max
                pltpu.VMEM((bt, tq, num_heads), jnp.float32),   # running denom
                pltpu.VMEM((bt, tq, D), jnp.float32),           # output acc
            ],
        ),
        compiler_params=pltpu.CompilerParams(
            dimension_semantics=("parallel", "parallel", "arbitrary"),
            vmem_limit_bytes=vmem_limit,
        ),
        cost_estimate=cost,
    )(q, k, v)


# ---------------------------------------------------------------------------
# Plain-JAX reference attention (matches the torch view/permute/bmm/softmax).
# ---------------------------------------------------------------------------
def _reference_attention(q, k, v, *, num_heads, scale=1.0):
    b, n, d = q.shape
    m = k.shape[1]
    p = d // num_heads
    qh = q.reshape(b, n, num_heads, p)
    kh = k.reshape(b, m, num_heads, p)
    vh = v.reshape(b, m, num_heads, p)
    s = jnp.einsum("bqhp,bkhp->bhqk", qh, kh) * scale
    a = jax.nn.softmax(s, axis=-1)
    o = jnp.einsum("bhqk,bkhp->bqhp", a, vh)
    return o.reshape(b, n, d)


# ---------------------------------------------------------------------------
# InducedSetAttentionBlock forward (similarity='dot' default, full_head=False,
# no masks).  The attention-weight side output is not materialized by design.
# ---------------------------------------------------------------------------
def _linear(x, w, b):
    # PyTorch nn.Linear: y = x @ W^T + b, W of shape (out, in).
    return jnp.einsum("...i,oi->...o", x, w) + b


def _layer_norm(x, gamma, beta, eps=1e-5):
    mu = jnp.mean(x, axis=-1, keepdims=True)
    var = jnp.mean((x - mu) ** 2, axis=-1, keepdims=True)
    return (x - mu) * jax.lax.rsqrt(var + eps) * gamma + beta


def _rff(params, x):
    # rFF block (Linear(d, d) + ReLU), as used in the Set Transformer.
    return jax.nn.relu(_linear(x, params["w"], params["b"]))


def _multihead_attention(params, queries, keys, values, num_heads, scale, attn_fn):
    # Projections stay in (b, n, d); heads are contiguous d-chunks, identical to
    # the PyTorch view/permute semantics — no host-side head transposes.
    q = _linear(queries, params["wq"], params["bq"])
    k = _linear(keys, params["wk"], params["bk"])
    v = _linear(values, params["wv"], params["bv"])
    o = attn_fn(q, k, v, num_heads=num_heads, scale=scale)
    return _linear(o, params["wo"], params["bo"])


def _mab(params, x, y, num_heads, scale, ln, attn_fn):
    a = _multihead_attention(params["mha"], x, y, y, num_heads, scale, attn_fn)
    if ln:
        h = _layer_norm(x + a, params["ln1_g"], params["ln1_b"])
        return _layer_norm(h + _rff(params["rff"], h), params["ln2_g"], params["ln2_b"])
    h = x + a
    return h + _rff(params["rff"], h)


def induced_set_attention_block(params, x, *, num_heads, similarity="dot", ln=True,
                                attn_fn=fused_multihead_attention):
    # TODO(synk): masked-attention path (qmasks/kmasks clip/exp renormalization)
    # not implemented; this is the m=None path of the PyTorch module.
    # TODO(synk): attention maps (the `a` side output) / store_qk / analysis hooks
    # are not materialized — the fused kernel never forms the attention matrix.
    b, _, d = x.shape
    p_head = d // num_heads
    scale = 1.0 if similarity == "dot" else 1.0 / math.sqrt(p_head)
    ind = jnp.broadcast_to(params["inducing_points"],
                           (b,) + params["inducing_points"].shape[1:])
    # (The original PyTorch code passes mab1's (out, attn) tuple to mab2 verbatim,
    #  a latent bug; we implement the intended ISAB: H = MAB(I, X); MAB(X, H).)
    h = _mab(params["mab1"], ind, x, num_heads, scale, ln, attn_fn)
    return _mab(params["mab2"], x, h, num_heads, scale, ln, attn_fn)


# ---------------------------------------------------------------------------
# Deterministic parameter construction.
# ---------------------------------------------------------------------------
def _init_linear(key, d_in, d_out):
    kw, kb = jax.random.split(key)
    lim = 1.0 / math.sqrt(d_in)
    w = jax.random.uniform(kw, (d_out, d_in), minval=-lim, maxval=lim, dtype=jnp.float32)
    b = jax.random.uniform(kb, (d_out,), minval=-lim, maxval=lim, dtype=jnp.float32)
    return w, b


def _init_mab(key, d):
    ks = jax.random.split(key, 5)
    wq, bq = _init_linear(ks[0], d, d)
    wk, bk = _init_linear(ks[1], d, d)
    wv, bv = _init_linear(ks[2], d, d)
    wo, bo = _init_linear(ks[3], d, d)
    wr, br = _init_linear(ks[4], d, d)
    return {
        "mha": dict(wq=wq, bq=bq, wk=wk, bk=bk, wv=wv, bv=bv, wo=wo, bo=bo),
        "rff": dict(w=wr, b=br),
        "ln1_g": jnp.ones((d,), jnp.float32), "ln1_b": jnp.zeros((d,), jnp.float32),
        "ln2_g": jnp.ones((d,), jnp.float32), "ln2_b": jnp.zeros((d,), jnp.float32),
    }


def init_isab_params(key, d, m_induce):
    k_ind, k1, k2 = jax.random.split(key, 3)
    return {
        "inducing_points": jax.random.normal(k_ind, (1, m_induce, d), jnp.float32),
        "mab1": _init_mab(k1, d),
        "mab2": _init_mab(k2, d),
    }


if __name__ == "__main__":
    key = jax.random.PRNGKey(0)
    k_par, k_x, k_q, k_k, k_v = jax.random.split(key, 5)

    # Small shapes consistent with the module: batch=2, set size n=8,
    # hidden d=32, heads h=4 (head dim 8), m=4 inducing points.
    B, N, D, H, M = 2, 8, 32, 4, 4

    # 1) Fused attention kernel (f32 compute) vs plain-JAX softmax reference.
    q = jax.random.normal(k_q, (B, N, D), jnp.float32)
    kk = jax.random.normal(k_k, (B, M, D), jnp.float32)
    vv = jax.random.normal(k_v, (B, M, D), jnp.float32)
    out_attn = jax.block_until_ready(
        fused_multihead_attention(q, kk, vv, num_heads=H, scale=1.0))
    ref_attn = _reference_attention(q, kk, vv, num_heads=H, scale=1.0)
    assert out_attn.shape == ref_attn.shape
    assert jnp.allclose(out_attn, ref_attn, atol=1e-4, rtol=1e-4)

    # 1b) bf16-fed fast path (halved HBM traffic, native-bf16 MXU); compared
    # against a reference computed from the same bf16-rounded inputs.
    out_bf16 = jax.block_until_ready(
        fused_multihead_attention(q, kk, vv, num_heads=H, scale=1.0,
                                  compute_dtype=jnp.bfloat16))
    qb, kb, vb = (t.astype(jnp.bfloat16).astype(jnp.float32) for t in (q, kk, vv))
    ref_bf16 = _reference_attention(qb, kb, vb, num_heads=H, scale=1.0)
    assert jnp.allclose(out_bf16, ref_bf16, atol=2e-2, rtol=2e-2)

    # 2) Full InducedSetAttentionBlock forward (Pallas attention core) vs reference.
    params = init_isab_params(k_par, D, M)
    x = jax.random.normal(k_x, (B, N, D), jnp.float32)
    out = induced_set_attention_block(params, x, num_heads=H, similarity="dot", ln=True)
    out = jax.block_until_ready(out)
    ref = induced_set_attention_block(params, x, num_heads=H, similarity="dot", ln=True,
                                      attn_fn=_reference_attention)
    assert out.shape == (B, N, D)
    assert jnp.allclose(out, ref, atol=1e-4, rtol=1e-4)

    print("KERNEL_OK")
</pallas_src>

<mosaic_0001>
module attributes {stable_mosaic.version = 11 : i64} {
  func.func @_mha_single_tile_kernel(%arg0: i32, %arg1: i32, %arg2: memref<1x8x32xf32, #tpu.memory_space<vmem>>, %arg3: memref<1x4x32xf32, #tpu.memory_space<vmem>>, %arg4: memref<1x4x32xf32, #tpu.memory_space<vmem>>, %arg5: memref<1x8x32xf32, #tpu.memory_space<vmem>>) attributes {dimension_semantics = [#tpu.dimension_semantics<parallel>, #tpu.dimension_semantics<parallel>], iteration_bounds = array<i64: 2, 1>, scalar_prefetch = 0 : i64, scratch_operands = 0 : i64, tpu.core_type = #tpu.core_type<tc>, window_params = [{transform_indices = @transform_0, window_bounds = array<i64: 1, 8, 32>}, {transform_indices = @transform_1, window_bounds = array<i64: 1, 4, 32>}, {transform_indices = @transform_2, window_bounds = array<i64: 1, 4, 32>}, {transform_indices = @transform_3, window_bounds = array<i64: 1, 8, 32>}]} {
    %c0 = arith.constant 0 : index
    %c0_0 = arith.constant 0 : index
    %c0_1 = arith.constant 0 : index
    %0 = vector.load %arg2[%c0, %c0_0, %c0_1] : memref<1x8x32xf32, #tpu.memory_space<vmem>>, vector<1x8x32xf32>
    %c0_2 = arith.constant 0 : index
    %c0_3 = arith.constant 0 : index
    %c0_4 = arith.constant 0 : index
    %1 = vector.load %arg3[%c0_2, %c0_3, %c0_4] : memref<1x4x32xf32, #tpu.memory_space<vmem>>, vector<1x4x32xf32>
    %c0_5 = arith.constant 0 : index
    %c0_6 = arith.constant 0 : index
    %c0_7 = arith.constant 0 : index
    %2 = vector.load %arg4[%c0_5, %c0_6, %c0_7] : memref<1x4x32xf32, #tpu.memory_space<vmem>>, vector<1x4x32xf32>
    %3 = vector.extract_strided_slice %0 {offsets = [0, 0, 0], sizes = [1, 8, 8], strides = [1, 1, 1]} : vector<1x8x32xf32> to vector<1x8x8xf32>
    %4 = vector.extract_strided_slice %1 {offsets = [0, 0, 0], sizes = [1, 4, 8], strides = [1, 1, 1]} : vector<1x4x32xf32> to vector<1x4x8xf32>
    %cst = arith.constant dense<0.000000e+00> : vector<1x8x4xf32>
    %5 = tpu.matmul %3, %4, %cst {dimension_numbers = #tpu.dot_dimension_numbers<[2], [2], [1], [1], [0, 0, 0, 1, 1, 1], [0], [0]>} : vector<1x8x8xf32>, vector<1x4x8xf32>, vector<1x8x4xf32> -> vector<1x8x4xf32>
    %cst_8 = arith.constant dense<0xFF800000> : vector<1x8xf32>
    %6 = vector.multi_reduction <maximumf>, %5, %cst_8 [2] : vector<1x8x4xf32> to vector<1x8xf32>
    %7 = vector.shape_cast %6 : vector<1x8xf32> to vector<1x8x1xf32>
    %8 = vector.broadcast %7 : vector<1x8x1xf32> to vector<1x8x4xf32>
    %9 = arith.subf %5, %8 : vector<1x8x4xf32>
    %10 = math.exp %9 : vector<1x8x4xf32>
    %cst_9 = arith.constant dense<0.000000e+00> : vector<1x8xf32>
    %11 = vector.multi_reduction <add>, %10, %cst_9 [2] : vector<1x8x4xf32> to vector<1x8xf32>
    %12 = vector.shape_cast %11 : vector<1x8xf32> to vector<1x8x1xf32>
    %13 = vector.extract_strided_slice %2 {offsets = [0, 0, 0], sizes = [1, 4, 8], strides = [1, 1, 1]} : vector<1x4x32xf32> to vector<1x4x8xf32>
    %cst_10 = arith.constant dense<0.000000e+00> : vector<1x8x8xf32>
    %14 = tpu.matmul %10, %13, %cst_10 {dimension_numbers = #tpu.dot_dimension_numbers<[2], [1], [1], [2], [0, 0, 0, 1, 1, 2], [0], [0]>} : vector<1x8x4xf32>, vector<1x4x8xf32>, vector<1x8x8xf32> -> vector<1x8x8xf32>
    %15 = tpu.reciprocal %12 : vector<1x8x1xf32> -> vector<1x8x1xf32>
    %16 = vector.broadcast %15 : vector<1x8x1xf32> to vector<1x8x8xf32>
    %17 = arith.mulf %14, %16 : vector<1x8x8xf32>
    %18 = vector.extract_strided_slice %0 {offsets = [0, 0, 8], sizes = [1, 8, 8], strides = [1, 1, 1]} : vector<1x8x32xf32> to vector<1x8x8xf32>
    %19 = vector.extract_strided_slice %1 {offsets = [0, 0, 8], sizes = [1, 4, 8], strides = [1, 1, 1]} : vector<1x4x32xf32> to vector<1x4x8xf32>
    %cst_11 = arith.constant dense<0.000000e+00> : vector<1x8x4xf32>
    %20 = tpu.matmul %18, %19, %cst_11 {dimension_numbers = #tpu.dot_dimension_numbers<[2], [2], [1], [1], [0, 0, 0, 1, 1, 1], [0], [0]>} : vector<1x8x8xf32>, vector<1x4x8xf32>, vector<1x8x4xf32> -> vector<1x8x4xf32>
    %cst_12 = arith.constant dense<0xFF800000> : vector<1x8xf32>
    %21 = vector.multi_reduction <maximumf>, %20, %cst_12 [2] : vector<1x8x4xf32> to vector<1x8xf32>
    %22 = vector.shape_cast %21 : vector<1x8xf32> to vector<1x8x1xf32>
    %23 = vector.broadcast %22 : vector<1x8x1xf32> to vector<1x8x4xf32>
    %24 = arith.subf %20, %23 : vector<1x8x4xf32>
    %25 = math.exp %24 : vector<1x8x4xf32>
    %cst_13 = arith.constant dense<0.000000e+00> : vector<1x8xf32>
    %26 = vector.multi_reduction <add>, %25, %cst_13 [2] : vector<1x8x4xf32> to vector<1x8xf32>
    %27 = vector.shape_cast %26 : vector<1x8xf32> to vector<1x8x1xf32>
    %28 = vector.extract_strided_slice %2 {offsets = [0, 0, 8], sizes = [1, 4, 8], strides = [1, 1, 1]} : vector<1x4x32xf32> to vector<1x4x8xf32>
    %cst_14 = arith.constant dense<0.000000e+00> : vector<1x8x8xf32>
    %29 = tpu.matmul %25, %28, %cst_14 {dimension_numbers = #tpu.dot_dimension_numbers<[2], [1], [1], [2], [0, 0, 0, 1, 1, 2], [0], [0]>} : vector<1x8x4xf32>, vector<1x4x8xf32>, vector<1x8x8xf32> -> vector<1x8x8xf32>
    %30 = tpu.reciprocal %27 : vector<1x8x1xf32> -> vector<1x8x1xf32>
    %31 = vector.broadcast %30 : vector<1x8x1xf32> to vector<1x8x8xf32>
    %32 = arith.mulf %29, %31 : vector<1x8x8xf32>
    %33 = vector.extract_strided_slice %0 {offsets = [0, 0, 16], sizes = [1, 8, 8], strides = [1, 1, 1]} : vector<1x8x32xf32> to vector<1x8x8xf32>
    %34 = vector.extract_strided_slice %1 {offsets = [0, 0, 16], sizes = [1, 4, 8], strides = [1, 1, 1]} : vector<1x4x32xf32> to vector<1x4x8xf32>
    %cst_15 = arith.constant dense<0.000000e+00> : vector<1x8x4xf32>
    %35 = tpu.matmul %33, %34, %cst_15 {dimension_numbers = #tpu.dot_dimension_numbers<[2], [2], [1], [1], [0, 0, 0, 1, 1, 1], [0], [0]>} : vector<1x8x8xf32>, vector<1x4x8xf32>, vector<1x8x4xf32> -> vector<1x8x4xf32>
    %cst_16 = arith.constant dense<0xFF800000> : vector<1x8xf32>
    %36 = vector.multi_reduction <maximumf>, %35, %cst_16 [2] : vector<1x8x4xf32> to vector<1x8xf32>
    %37 = vector.shape_cast %36 : vector<1x8xf32> to vector<1x8x1xf32>
    %38 = vector.broadcast %37 : vector<1x8x1xf32> to vector<1x8x4xf32>
    %39 = arith.subf %35, %38 : vector<1x8x4xf32>
    %40 = math.exp %39 : vector<1x8x4xf32>
    %cst_17 = arith.constant dense<0.000000e+00> : vector<1x8xf32>
    %41 = vector.multi_reduction <add>, %40, %cst_17 [2] : vector<1x8x4xf32> to vector<1x8xf32>
    %42 = vector.shape_cast %41 : vector<1x8xf32> to vector<1x8x1xf32>
    %43 = vector.extract_strided_slice %2 {offsets = [0, 0, 16], sizes = [1, 4, 8], strides = [1, 1, 1]} : vector<1x4x32xf32> to vector<1x4x8xf32>
    %cst_18 = arith.constant dense<0.000000e+00> : vector<1x8x8xf32>
    %44 = tpu.matmul %40, %43, %cst_18 {dimension_numbers = #tpu.dot_dimension_numbers<[2], [1], [1], [2], [0, 0, 0, 1, 1, 2], [0], [0]>} : vector<1x8x4xf32>, vector<1x4x8xf32>, vector<1x8x8xf32> -> vector<1x8x8xf32>
    %45 = tpu.reciprocal %42 : vector<1x8x1xf32> -> vector<1x8x1xf32>
    %46 = vector.broadcast %45 : vector<1x8x1xf32> to vector<1x8x8xf32>
    %47 = arith.mulf %44, %46 : vector<1x8x8xf32>
    %48 = vector.extract_strided_slice %0 {offsets = [0, 0, 24], sizes = [1, 8, 8], strides = [1, 1, 1]} : vector<1x8x32xf32> to vector<1x8x8xf32>
    %49 = vector.extract_strided_slice %1 {offsets = [0, 0, 24], sizes = [1, 4, 8], strides = [1, 1, 1]} : vector<1x4x32xf32> to vector<1x4x8xf32>
    %cst_19 = arith.constant dense<0.000000e+00> : vector<1x8x4xf32>
    %50 = tpu.matmul %48, %49, %cst_19 {dimension_numbers = #tpu.dot_dimension_numbers<[2], [2], [1], [1], [0, 0, 0, 1, 1, 1], [0], [0]>} : vector<1x8x8xf32>, vector<1x4x8xf32>, vector<1x8x4xf32> -> vector<1x8x4xf32>
    %cst_20 = arith.constant dense<0xFF800000> : vector<1x8xf32>
    %51 = vector.multi_reduction <maximumf>, %50, %cst_20 [2] : vector<1x8x4xf32> to vector<1x8xf32>
    %52 = vector.shape_cast %51 : vector<1x8xf32> to vector<1x8x1xf32>
    %53 = vector.broadcast %52 : vector<1x8x1xf32> to vector<1x8x4xf32>
    %54 = arith.subf %50, %53 : vector<1x8x4xf32>
    %55 = math.exp %54 : vector<1x8x4xf32>
    %cst_21 = arith.constant dense<0.000000e+00> : vector<1x8xf32>
    %56 = vector.multi_reduction <add>, %55, %cst_21 [2] : vector<1x8x4xf32> to vector<1x8xf32>
    %57 = vector.shape_cast %56 : vector<1x8xf32> to vector<1x8x1xf32>
    %58 = vector.extract_strided_slice %2 {offsets = [0, 0, 24], sizes = [1, 4, 8], strides = [1, 1, 1]} : vector<1x4x32xf32> to vector<1x4x8xf32>
    %cst_22 = arith.constant dense<0.000000e+00> : vector<1x8x8xf32>
    %59 = tpu.matmul %55, %58, %cst_22 {dimension_numbers = #tpu.dot_dimension_numbers<[2], [1], [1], [2], [0, 0, 0, 1, 1, 2], [0], [0]>} : vector<1x8x4xf32>, vector<1x4x8xf32>, vector<1x8x8xf32> -> vector<1x8x8xf32>
    %60 = tpu.reciprocal %57 : vector<1x8x1xf32> -> vector<1x8x1xf32>
    %61 = vector.broadcast %60 : vector<1x8x1xf32> to vector<1x8x8xf32>
    %62 = arith.mulf %59, %61 : vector<1x8x8xf32>
    %63 = tpu.concatenate %17, %32, %47, %62 in 2 : vector<1x8x8xf32>, vector<1x8x8xf32>, vector<1x8x8xf32>, vector<1x8x8xf32> -> vector<1x8x32xf32>
    %c0_23 = arith.constant 0 : index
    %c0_24 = arith.constant 0 : index
    %c0_25 = arith.constant 0 : index
    %64 = vector.load %arg5[%c0_23, %c0_24, %c0_25] : memref<1x8x32xf32, #tpu.memory_space<vmem>>, vector<1x8x32xf32>
    tpu.vector_store %arg5[%c0_23, %c0_24, %c0_25], %63 {strides = array<i32>} : memref<1x8x32xf32, #tpu.memory_space<vmem>>, vector<1x8x32xf32>,
    return
  }
  func.func @transform_0(%arg0: i32, %arg1: i32) -> (i32, i32, i32) {
    %c0_i32 = arith.constant 0 : i32
    %c0_i32_0 = arith.constant 0 : i32
    return %arg0, %arg1, %c0_i32 : i32, i32, i32
  }
  func.func @transform_1(%arg0: i32, %arg1: i32) -> (i32, i32, i32) {
    %c0_i32 = arith.constant 0 : i32
    %c0_i32_0 = arith.constant 0 : i32
    %c0_i32_1 = arith.constant 0 : i32
    return %arg0, %c0_i32, %c0_i32_0 : i32, i32, i32
  }
  func.func @transform_2(%arg0: i32, %arg1: i32) -> (i32, i32, i32) {
    %c0_i32 = arith.constant 0 : i32
    %c0_i32_0 = arith.constant 0 : i32
    %c0_i32_1 = arith.constant 0 : i32
    return %arg0, %c0_i32, %c0_i32_0 : i32, i32, i32
  }
  func.func @transform_3(%arg0: i32, %arg1: i32) -> (i32, i32, i32) {
    %c0_i32 = arith.constant 0 : i32
    %c0_i32_0 = arith.constant 0 : i32
    return %arg0, %arg1, %c0_i32 : i32, i32, i32
  }
}

</mosaic_0001>

<llo_original>
// kernel: tpu_custom_call.1
$region0: #{tpu_custom_call.1}
  #allocation0 [shape = 'u32[]', space=smem, size = 0x4, offset = 0x4, fixed_abs, tag = 'smem constant byte address 0x4 - core index']
  #allocation1 [shape = 'u32[144,128]{1,0:T(1,128)}', space=vmem, size = 0x12000, scoped, tag = 'internal scratch']
  %s0 = inlined_call_operand.hbm [shape: f32[2,8,32], index: 0, kind: input, shape index: {}]
  %s1 = inlined_call_operand.hbm [shape: f32[2,4,32], index: 1, kind: input, shape index: {}]
  %s2 = inlined_call_operand.hbm [shape: f32[2,4,32], index: 2, kind: input, shape index: {}]
  %s3 = inlined_call_operand.hbm [shape: f32[2,8,32], index: 3, kind: output, shape index: {}]
  %s4 = sld [smem:[#allocation0]]
  $region57: #{tpu_custom_call.1} parent=0
    _
  %s6 = ssub.s32 1, %s4
  %s7 = scalar_select 0, %s6, %s4
  $region1: #{tpu_custom_call.1} parent=0
    #allocation2 [shape = 'u8[8192]{0}', space=vmem, size = 0x2000, scoped, tag = 'input window, operand 0']
    #allocation3 [shape = 's32[2]{0}', space=sflag, size = 0x8, scoped, tag = 'scoped memory for tpu_custom_call.1']
    #allocation4 [shape = 's32[2]{0}', space=sflag, size = 0x8, scoped, tag = 'scoped memory for tpu_custom_call.1']
    #allocation5 [shape = 'u8[4096]{0}', space=vmem, size = 0x1000, scoped, tag = 'input window, operand 1']
    #allocation6 [shape = 's32[2]{0}', space=sflag, size = 0x8, scoped, tag = 'scoped memory for tpu_custom_call.1']
    #allocation7 [shape = 'u8[4096]{0}', space=vmem, size = 0x1000, scoped, tag = 'input window, operand 2']
    #allocation8 [shape = 'u8[8192]{0}', space=vmem, size = 0x2000, scoped, tag = 'output window, operand 0']
    %8 = vsyncpa [#allocation3], 0
    %s9 = scalar_lea.sflag [#allocation3], 1
    %10 = vsyncpa %s9, 0
    %11 = vsyncpa [#allocation6], 0
    %s12 = scalar_lea.sflag [#allocation6], 1
    %13 = vsyncpa %s12, 0
    %14 = vsyncpa [#allocation4], 0
    %s15 = scalar_lea.sflag [#allocation4], 1
    %16 = vsyncpa %s15, 0
    loop: start=0, step=1, limit=4
    $region2: #{tpu_custom_call.1} parent=1 // loop_pre_header
      _
    $region3: #{tpu_custom_call.1} parent=1 // loop_header
      %s18 = sphi 0, %s22
      %p19 = scmp.ge.s32.totalorder %s18, 4
      %s25 = sphi 0, %s37
      %s26 = sphi 0, %s33
      %s27 = sphi 0, %s25
      %s28 = sphi 0, %s26
      %s29 = sphi 0, %s27
      %s30 = sphi 0, %s28
      %s42 = sphi 0, %s44
      %s45 = sphi 0, %s42
      %s46 = sphi 0, %s45
      %s62 = sphi 0, %s46
      %s68 = sphi 0, %s70
      %s71 = sphi 0, %s68
      %s72 = sphi 0, %s71
      %s88 = sphi 0, %s72
      %s94 = sphi 0, %s96
      %s97 = sphi 0, %s94
      %s98 = sphi 0, %s97
      %s114 = sphi 0, %s98
      %s122 = sphi 0, %s124
      %s125 = sphi 0, %s122
      %s126 = sphi 0, %s125
      %s142 = sphi 0, %s126
    $region4: #{tpu_custom_call.1} parent=1 // loop_header_branch
      %21 = sbr.rel (%p19) target = $region8
    $region5: #{tpu_custom_call.1} parent=1 // loop_body
      %s23 = ssub.s32 %s18, 1
      %s24 = ssub.s32 %s18, 2
      %s31 = sadd.s32 1, %s26
      %p32 = scmp.ge.s32.totalorder %s31, 1
      %s33 = scalar_select %p32, 0, %s31
      %s34 = sadd.s32 1, %s25
      %s35 = scalar_select %p32, %s34, %s25
      %p36 = scmp.ge.s32.totalorder %s35, 2
      %s37 = scalar_select %p36, 0, %s35
      %s38 = ssub.s32 %s25, %s37
      %s39 = ssub.s32 %s26, %s33
      %s40 = sor.u32 %s38, %s39
      %p41 = scmp.eq.s32.totalorder %s40, 0
      %s43 = sadd.s32 %s42, 1
      %s44 = scalar_select %p41, %s42, %s43
      %p47 = pneg %p41
      %p48 = scmp.eq.s32.totalorder %s18, 1
      %p49 = por %p47, %p48
      %p50 = scmp.ne.s32.totalorder %s42, %s45
      %p51 = scmp.eq.s32.totalorder %s18, 0
      %p52 = por %p50, %p51
      %p53 = scmp.ne.s32.totalorder %s42, %s45
      %p54 = scmp.eq.s32.totalorder %s23, 1
      %p55 = por %p53, %p54
      %p56 = scmp.ne.s32.totalorder %s45, %s46
      %p57 = scmp.eq.s32.totalorder %s23, 0
      %p58 = por %p56, %p57
      %p59 = scmp.ne.s32.totalorder %s45, %s46
      %p60 = scmp.eq.s32.totalorder %s24, 1
      %p61 = por %p59, %p60
      %p63 = scmp.ne.s32.totalorder %s46, %s62
      %p64 = scmp.eq.s32.totalorder %s24, 0
      %p65 = por %p63, %p64
      %s66 = ssub.s32 %s25, %s37
      %p67 = scmp.eq.s32.totalorder %s66, 0
      %s69 = sadd.s32 %s68, 1
      %s70 = scalar_select %p67, %s68, %s69
      %p73 = pneg %p67
      %p74 = scmp.eq.s32.totalorder %s18, 1
      %p75 = por %p73, %p74
      %p76 = scmp.ne.s32.totalorder %s68, %s71
      %p77 = scmp.eq.s32.totalorder %s18, 0
      %p78 = por %p76, %p77
      %p79 = scmp.ne.s32.totalorder %s68, %s71
      %p80 = scmp.eq.s32.totalorder %s23, 1
      %p81 = por %p79, %p80
      %p82 = scmp.ne.s32.totalorder %s71, %s72
      %p83 = scmp.eq.s32.totalorder %s23, 0
      %p84 = por %p82, %p83
      %p85 = scmp.ne.s32.totalorder %s71, %s72
      %p86 = scmp.eq.s32.totalorder %s24, 1
      %p87 = por %p85, %p86
      %p89 = scmp.ne.s32.totalorder %s72, %s88
      %p90 = scmp.eq.s32.totalorder %s24, 0
      %p91 = por %p89, %p90
      %s92 = ssub.s32 %s25, %s37
      %p93 = scmp.eq.s32.totalorder %s92, 0
      %s95 = sadd.s32 %s94, 1
      %s96 = scalar_select %p93, %s94, %s95
      %p99 = pneg %p93
      %p100 = scmp.eq.s32.totalorder %s18, 1
      %p101 = por %p99, %p100
      %p102 = scmp.ne.s32.totalorder %s94, %s97
      %p103 = scmp.eq.s32.totalorder %s18, 0
      %p104 = por %p102, %p103
      %p105 = scmp.ne.s32.totalorder %s94, %s97
      %p106 = scmp.eq.s32.totalorder %s23, 1
      %p107 = por %p105, %p106
      %p108 = scmp.ne.s32.totalorder %s97, %s98
      %p109 = scmp.eq.s32.totalorder %s23, 0
      %p110 = por %p108, %p109
      %p111 = scmp.ne.s32.totalorder %s97, %s98
      %p112 = scmp.eq.s32.totalorder %s24, 1
      %p113 = por %p111, %p112
      %p115 = scmp.ne.s32.totalorder %s98, %s114
      %p116 = scmp.eq.s32.totalorder %s24, 0
      %p117 = por %p115, %p116
      %s118 = ssub.s32 %s25, %s37
      %s119 = ssub.s32 %s26, %s33
      %s120 = sor.u32 %s118, %s119
      %p121 = scmp.eq.s32.totalorder %s120, 0
      %s123 = sadd.s32 %s122, 1
      %s124 = scalar_select %p121, %s122, %s123
      %p127 = pneg %p121
      %p128 = scmp.eq.s32.totalorder %s18, 1
      %p129 = por %p127, %p128
      %p130 = scmp.ne.s32.totalorder %s122, %s125
      %p131 = scmp.eq.s32.totalorder %s18, 0
      %p132 = por %p130, %p131
      %p133 = scmp.ne.s32.totalorder %s122, %s125
      %p134 = scmp.eq.s32.totalorder %s23, 1
      %p135 = por %p133, %p134
      %p136 = scmp.ne.s32.totalorder %s125, %s126
      %p137 = scmp.eq.s32.totalorder %s23, 0
      %p138 = por %p136, %p137
      %p139 = scmp.ne.s32.totalorder %s125, %s126
      %p140 = scmp.eq.s32.totalorder %s24, 1
      %p141 = por %p139, %p140
      %p143 = scmp.ne.s32.totalorder %s126, %s142
      %p144 = scmp.eq.s32.totalorder %s24, 0
      %p145 = por %p143, %p144
      %p146 = scmp.le.s32.totalorder 1, %s18
      %p147 = scmp.lt.s32.totalorder %s18, 3
      %p148 = pnand %p146, %p147
      %p149 = pneg %p148
      // Predicated region
      $region9: #{tpu_custom_call.1} parent=5 // pred_check
        _
      $region10: #{tpu_custom_call.1} parent=5 // pred_check_branch
        %151 = sbr.rel (%p148) target = $region12
      $region11: #{tpu_custom_call.1} parent=5 // pred_region
        %s152 = ssub.s32 %s18, 1
      $region12: #{tpu_custom_call.1} parent=5 // pred_fallthru
        _
      %p153 = scmp.lt.s32.totalorder %s18, 2
      // Predicated region
      $region13: #{tpu_custom_call.1} parent=5 // pred_check
        %p154 = pneg %p153
      $region14: #{tpu_custom_call.1} parent=5 // pred_check_branch
        %156 = sbr.rel (%p154) target = $region16
      $region15: #{tpu_custom_call.1} parent=5 // pred_region
        // Predicated region
        $region17: #{tpu_custom_call.1} parent=15 // pred_check
          %p157 = pneg %p52
        $region18: #{tpu_custom_call.1} parent=15 // pred_check_branch
          %159 = sbr.rel (%p157) target = $region20
        $region19: #{tpu_custom_call.1} parent=15 // pred_region
          %s160 = sand.u32 %s42, 1
          %s161 = scalar_lea.sflag [#allocation3], %s160
          %s162 = sand.u32 %s42, 1
          %s163 = smul.addr %s162, 8
          %s164 = scalar_lea.vmem [#allocation2], %s163
          %s166 = ssub.s32 128, 128
          %167 = vsyncadd %s161, %s166
          %s168 = sadd.s32 %s26, %s25
          %s169 = smul.addr %s168, 128
          %s170 = scalar_lea.hbm %s0, %s169
          %s172 = sshll.u32 %s164, 4
          %s173 = int_to_ptr.vmem [resolvable:$true] %s172
          %175 = dma.hbm_to_vmem [thread:$0]  %s170, 128, %s173, %s161
        $region20: #{tpu_custom_call.1} parent=15 // pred_fallthru
          _
        // Predicated region
        $region21: #{tpu_custom_call.1} parent=15 // pred_check
          %p176 = pneg %p78
        $region22: #{tpu_custom_call.1} parent=15 // pred_check_branch
          %178 = sbr.rel (%p176) target = $region24
        $region23: #{tpu_custom_call.1} parent=15 // pred_region
          %s179 = sand.u32 %s18, 1
          %s180 = scalar_lea.sflag [#allocation6], %s179
          %s181 = sand.u32 %s68, 1
          %s182 = smul.addr %s181, 4
          %s183 = scalar_lea.vmem [#allocation5], %s182
          %s185 = ssub.s32 64, 64
          %186 = vsyncadd %s180, %s185
          %s187 = smul.addr %s25, 64
          %s188 = scalar_lea.hbm %s1, %s187
          %s190 = sshll.u32 %s183, 4
          %s191 = int_to_ptr.vmem [resolvable:$true] %s190
          %193 = dma.hbm_to_vmem [thread:$0]  %s188, 64, %s191, %s180
        $region24: #{tpu_custom_call.1} parent=15 // pred_fallthru
          _
        // Predicated region
        $region25: #{tpu_custom_call.1} parent=15 // pred_check
          %p194 = pneg %p104
        $region26: #{tpu_custom_call.1} parent=15 // pred_check_branch
          %196 = sbr.rel (%p194) target = $region28
        $region27: #{tpu_custom_call.1} parent=15 // pred_region
          %s197 = sand.u32 %s18, 1
          %s198 = scalar_lea.sflag [#allocation6], %s197
          %s199 = sand.u32 %s94, 1
          %s200 = smul.addr %s199, 4
          %s201 = scalar_lea.vmem [#allocation7], %s200
          %s203 = ssub.s32 64, 64
          %204 = vsyncadd %s198, %s203
          %s205 = smul.addr %s25, 64
          %s206 = scalar_lea.hbm %s2, %s205
          %s208 = sshll.u32 %s201, 4
          %s209 = int_to_ptr.vmem [resolvable:$true] %s208
          %211 = dma.hbm_to_vmem [thread:$0]  %s206, 64, %s209, %s198
        $region28: #{tpu_custom_call.1} parent=15 // pred_fallthru
          _
      $region16: #{tpu_custom_call.1} parent=5 // pred_fallthru
        _
      %p212 = scmp.le.s32.totalorder 1, %s18
      %p213 = scmp.lt.s32.totalorder %s18, 3
      %p214 = pnand %p212, %p213
      %p215 = pneg %p214
      // Predicated region
      $region29: #{tpu_custom_call.1} parent=5 // pred_check
        _
      $region30: #{tpu_custom_call.1} parent=5 // pred_check_branch
        %217 = sbr.rel (%p214) target = $region32
      $region31: #{tpu_custom_call.1} parent=5 // pred_region
        %s218 = ssub.s32 %s18, 1
        %s219 = sand.u32 %s45, 1
        %s220 = scalar_lea.sflag [#allocation3], %s219
        %s221 = sand.u32 %s45, 1
        %s222 = smul.addr %s221, 8
        %s223 = scalar_lea.vmem [#allocation2], %s222
        // Predicated region
        $region33: #{tpu_custom_call.1} parent=31 // pred_check
          %p224 = pneg %p58
        $region34: #{tpu_custom_call.1} parent=31 // pred_check_branch
          %226 = sbr.rel (%p224) target = $region36
        $region35: #{tpu_custom_call.1} parent=31 // pred_region
          %227 = dma.done %s220, 128
        $region36: #{tpu_custom_call.1} parent=31 // pred_fallthru
          _
        %s228 = sand.u32 %s23, 1
        %s229 = scalar_lea.sflag [#allocation6], %s228
        %s230 = sand.u32 %s71, 1
        %s231 = smul.addr %s230, 4
        %s232 = scalar_lea.vmem [#allocation5], %s231
        // Predicated region
        $region37: #{tpu_custom_call.1} parent=31 // pred_check
          %p233 = pneg %p84
        $region38: #{tpu_custom_call.1} parent=31 // pred_check_branch
          %235 = sbr.rel (%p233) target = $region40
        $region39: #{tpu_custom_call.1} parent=31 // pred_region
          %236 = dma.done %s229, 64
        $region40: #{tpu_custom_call.1} parent=31 // pred_fallthru
          _
        %s237 = sand.u32 %s23, 1
        %s238 = scalar_lea.sflag [#allocation6], %s237
        %s239 = sand.u32 %s97, 1
        %s240 = smul.addr %s239, 4
        %s241 = scalar_lea.vmem [#allocation7], %s240
        // Predicated region
        $region41: #{tpu_custom_call.1} parent=31 // pred_check
          %p242 = pneg %p110
        $region42: #{tpu_custom_call.1} parent=31 // pred_check_branch
          %244 = sbr.rel (%p242) target = $region44
        $region43: #{tpu_custom_call.1} parent=31 // pred_region
          %245 = dma.done %s238, 64
        $region44: #{tpu_custom_call.1} parent=31 // pred_fallthru
          _
        %s246 = sand.u32 %s45, 1
        %s247 = scalar_lea.sflag [#allocation3], %s246
        %s248 = sand.u32 %s45, 1
        %s249 = smul.addr %s248, 8
        %s250 = scalar_lea.vmem [#allocation2], %s249
        %p251 = pneg %p58
        %p252 = pneg %p55
        %s253 = sand.u32 %s23, 1
        %s254 = scalar_lea.sflag [#allocation6], %s253
        %s255 = sand.u32 %s71, 1
        %s256 = smul.addr %s255, 4
        %s257 = scalar_lea.vmem [#allocation5], %s256
        %p258 = pneg %p84
        %p259 = pneg %p81
        %s260 = sand.u32 %s23, 1
        %s261 = scalar_lea.sflag [#allocation6], %s260
        %s262 = sand.u32 %s97, 1
        %s263 = smul.addr %s262, 4
        %s264 = scalar_lea.vmem [#allocation7], %s263
        %p265 = pneg %p110
        %p266 = pneg %p107
        %p267 = pneg %p138
        %p268 = pneg %p135
        %s269 = sand.u32 %s125, 1
        %s270 = scalar_lea.sflag [#allocation4], %s269
        %s271 = sand.u32 %s125, 1
        %s272 = smul.addr %s271, 8
        %s273 = scalar_lea.vmem [#allocation8], %s272
        %v274 = vld [vmem:[%s223] sm:$0xff]
        %v275 = vld [vmem:[%s232] sm:$0xf]
        %v276 = vld [vmem:[%s241] sm:$0xf]
        %vm277 = vcmask 64512
        %v279 = vsel %vm277, %v274, 0
        %v282 = vsel %vm277, %v275, 0
        %284 = vmatprep.subr.mxu0 0.0
        %285 = vmatpush1.xpose.msra.mxu0 %v282
        %286 = vmatprep.subr.mxu0 0.0
        %287 = vmatpush1.xpose.msra.mxu0 0.0
        %288 = vmatprep.subr.mxu0 0.0
        %289 = vmatpush1.xpose.msra.mxu0 0.0
        %290 = vmatprep.subr.mxu0 0.0
        %291 = vmatpush1.xpose.msra.mxu0 0.0
        %292 = vmatprep.subr.mxu0 0.0
        %293 = vmatpush1.xpose.msra.mxu0 0.0
        %294 = vmatprep.subr.mxu0 0.0
        %295 = vmatpush1.xpose.msra.mxu0 0.0
        %296 = vmatprep.subr.mxu0 0.0
        %297 = vmatpush1.xpose.msra.mxu0 0.0
        %298 = vmatprep.subr.mxu0 0.0
        %299 = vmatpush1.xpose.msra.mxu0 0.0
        %300 = vmatprep.subr.mxu0 0.0
        %301 = vmatpush1.xpose.msra.mxu0 0.0
        %302 = vmatprep.subr.mxu0 0.0
        %303 = vmatpush1.xpose.msra.mxu0 0.0
        %304 = vmatprep.subr.mxu0 0.0
        %305 = vmatpush1.xpose.msra.mxu0 0.0
        %306 = vmatprep.subr.mxu0 0.0
        %307 = vmatpush1.xpose.msra.mxu0 0.0
        %308 = vmatprep.subr.mxu0 0.0
        %309 = vmatpush1.xpose.msra.mxu0 0.0
        %310 = vmatprep.subr.mxu0 0.0
        %311 = vmatpush1.xpose.msra.mxu0 0.0
        %312 = vmatprep.subr.mxu0 0.0
        %313 = vmatpush1.xpose.msra.mxu0 0.0
        %314 = vmatprep.subr.mxu0 0.0
        %315 = vmatpush1.xpose.msra.mxu0 0.0
        %316 = vmatprep.subr.mxu0 0.0
        %317 = vmatpush1.xpose.msra.mxu0 0.0
        %318 = vmatprep.subr.mxu0 0.0
        %319 = vmatpush1.xpose.msra.mxu0 0.0
        %320 = vmatprep.subr.mxu0 0.0
        %321 = vmatpush1.xpose.msra.mxu0 0.0
        %322 = vmatprep.subr.mxu0 0.0
        %323 = vmatpush1.xpose.msra.mxu0 0.0
        %324 = vmatprep.subr.mxu0 0.0
        %325 = vmatpush1.xpose.msra.mxu0 0.0
        %326 = vmatprep.subr.mxu0 0.0
        %327 = vmatpush1.xpose.msra.mxu0 0.0
        %328 = vmatprep.subr.mxu0 0.0
        %329 = vmatpush1.xpose.msra.mxu0 0.0
        %330 = vmatprep.subr.mxu0 0.0
        %331 = vmatpush1.xpose.msra.mxu0 0.0
        %332 = vmatprep.subr.mxu0 0.0
        %333 = vmatpush1.xpose.msra.mxu0 0.0
        %334 = vmatprep.subr.mxu0 0.0
        %335 = vmatpush1.xpose.msra.mxu0 0.0
        %336 = vmatprep.subr.mxu0 0.0
        %337 = vmatpush1.xpose.msra.mxu0 0.0
        %338 = vmatprep.subr.mxu0 0.0
        %339 = vmatpush1.xpose.msra.mxu0 0.0
        %340 = vmatprep.subr.mxu0 0.0
        %341 = vmatpush1.xpose.msra.mxu0 0.0
        %342 = vmatprep.subr.mxu0 0.0
        %343 = vmatpush1.xpose.msra.mxu0 0.0
        %344 = vmatprep.subr.mxu0 0.0
        %345 = vmatpush1.xpose.msra.mxu0 0.0
        %346 = vmatprep.subr.mxu0 0.0
        %347 = vmatpush1.xpose.msra.mxu0 0.0
        %348 = vmatprep.mubr.f32.mxu0 0.0
        %349 = vmatmul.mubr.f32.gmra.mrb[0].mxu0 %v279
        %v350 = vpop.f32.mrb[0].mxu0
        %v351 = vadd.f32 0.0, %v350
        %v352 = vpop.f32.mrb[0].mxu0
        %353 = vdwg.mxu0
        %vm354 = vcmask 31744
        %v355 = vsel %vm354, %v351, -inf
        %356 = vmax.xlane.f32.xlu0 %v355
        %v357 = vpop.xlane.xlu0 %356
        %v358 = vsub.f32 %v351, %v357
        %v359 = vmul.f32 %v358, 1.442695
        %v360 = vpow.pop %v359
        %v361 = vsel %vm354, %v360, 0.0
        %362 = vadd.xlane.f32.xlu0 %v361
        %v363 = vpop.xlane.xlu0 %362
        %v365 = vsel %vm354, %v360, 0
        %vm367 = vcmask 1043456
        %v369 = vsel %vm367, %v276, 0
        %371 = vmatprep.subr.mxu0 0.0
        %372 = vmatpush1.msra.mxu0 %v369
        %373 = vmatprep.subr.mxu0 0.0
        %374 = vmatpush1.msra.mxu0 0.0
        %375 = vmatprep.subr.mxu0 0.0
        %376 = vmatpush1.msra.mxu0 0.0
        %377 = vmatprep.subr.mxu0 0.0
        %378 = vmatpush1.msra.mxu0 0.0
        %379 = vmatprep.subr.mxu0 0.0
        %380 = vmatpush1.msra.mxu0 0.0
        %381 = vmatprep.subr.mxu0 0.0
        %382 = vmatpush1.msra.mxu0 0.0
        %383 = vmatprep.subr.mxu0 0.0
        %384 = vmatpush1.msra.mxu0 0.0
        %385 = vmatprep.subr.mxu0 0.0
        %386 = vmatpush1.msra.mxu0 0.0
        %387 = vmatprep.subr.mxu0 0.0
        %388 = vmatpush1.msra.mxu0 0.0
        %389 = vmatprep.subr.mxu0 0.0
        %390 = vmatpush1.msra.mxu0 0.0
        %391 = vmatprep.subr.mxu0 0.0
        %392 = vmatpush1.msra.mxu0 0.0
        %393 = vmatprep.subr.mxu0 0.0
        %394 = vmatpush1.msra.mxu0 0.0
        %395 = vmatprep.subr.mxu0 0.0
        %396 = vmatpush1.msra.mxu0 0.0
        %397 = vmatprep.subr.mxu0 0.0
        %398 = vmatpush1.msra.mxu0 0.0
        %399 = vmatprep.subr.mxu0 0.0
        %400 = vmatpush1.msra.mxu0 0.0
        %401 = vmatprep.subr.mxu0 0.0
        %402 = vmatpush1.msra.mxu0 0.0
        %403 = vmatprep.subr.mxu0 0.0
        %404 = vmatpush1.msra.mxu0 0.0
        %405 = vmatprep.subr.mxu0 0.0
        %406 = vmatpush1.msra.mxu0 0.0
        %407 = vmatprep.subr.mxu0 0.0
        %408 = vmatpush1.msra.mxu0 0.0
        %409 = vmatprep.subr.mxu0 0.0
        %410 = vmatpush1.msra.mxu0 0.0
        %411 = vmatprep.subr.mxu0 0.0
        %412 = vmatpush1.msra.mxu0 0.0
        %413 = vmatprep.subr.mxu0 0.0
        %414 = vmatpush1.msra.mxu0 0.0
        %415 = vmatprep.subr.mxu0 0.0
        %416 = vmatpush1.msra.mxu0 0.0
        %417 = vmatprep.subr.mxu0 0.0
        %418 = vmatpush1.msra.mxu0 0.0
        %419 = vmatprep.subr.mxu0 0.0
        %420 = vmatpush1.msra.mxu0 0.0
        %421 = vmatprep.subr.mxu0 0.0
        %422 = vmatpush1.msra.mxu0 0.0
        %423 = vmatprep.subr.mxu0 0.0
        %424 = vmatpush1.msra.mxu0 0.0
        %425 = vmatprep.subr.mxu0 0.0
        %426 = vmatpush1.msra.mxu0 0.0
        %427 = vmatprep.subr.mxu0 0.0
        %428 = vmatpush1.msra.mxu0 0.0
        %429 = vmatprep.subr.mxu0 0.0
        %430 = vmatpush1.msra.mxu0 0.0
        %431 = vmatprep.subr.mxu0 0.0
        %432 = vmatpush1.msra.mxu0 0.0
        %433 = vmatprep.subr.mxu0 0.0
        %434 = vmatpush1.msra.mxu0 0.0
        %435 = vmatprep.mubr.f32.mxu0 0.0
        %436 = vmatmul.mubr.f32.gmra.mrb[0].mxu0 %v365
        %v437 = vpop.f32.mrb[0].mxu0
        %v438 = vadd.f32 0.0, %v437
        %v439 = vpop.f32.mrb[0].mxu0
        %440 = vdwg.mxu0
        %v441 = vrcp.pop %v363
        %v442 = vmul.f32 %v438, %v441
        %443 = vrot.lane.b32.xlu0 %v274, 120
        %v444 = vpop.permute.xlu0 %443
        %445 = vrot.lane.b32.xlu0 %v275, 120
        %v446 = vpop.permute.xlu0 %445
        %v447 = vsel %vm277, %v444, 0
        %v449 = vsel %vm277, %v446, 0
        %451 = vmatprep.subr.mxu0 0.0
        %452 = vmatpush1.xpose.msra.mxu0 %v449
        %453 = vmatprep.subr.mxu0 0.0
        %454 = vmatpush1.xpose.msra.mxu0 0.0
        %455 = vmatprep.subr.mxu0 0.0
        %456 = vmatpush1.xpose.msra.mxu0 0.0
        %457 = vmatprep.subr.mxu0 0.0
        %458 = vmatpush1.xpose.msra.mxu0 0.0
        %459 = vmatprep.subr.mxu0 0.0
        %460 = vmatpush1.xpose.msra.mxu0 0.0
        %461 = vmatprep.subr.mxu0 0.0
        %462 = vmatpush1.xpose.msra.mxu0 0.0
        %463 = vmatprep.subr.mxu0 0.0
        %464 = vmatpush1.xpose.msra.mxu0 0.0
        %465 = vmatprep.subr.mxu0 0.0
        %466 = vmatpush1.xpose.msra.mxu0 0.0
        %467 = vmatprep.subr.mxu0 0.0
        %468 = vmatpush1.xpose.msra.mxu0 0.0
        %469 = vmatprep.subr.mxu0 0.0
        %470 = vmatpush1.xpose.msra.mxu0 0.0
        %471 = vmatprep.subr.mxu0 0.0
        %472 = vmatpush1.xpose.msra.mxu0 0.0
        %473 = vmatprep.subr.mxu0 0.0
        %474 = vmatpush1.xpose.msra.mxu0 0.0
        %475 = vmatprep.subr.mxu0 0.0
        %476 = vmatpush1.xpose.msra.mxu0 0.0
        %477 = vmatprep.subr.mxu0 0.0
        %478 = vmatpush1.xpose.msra.mxu0 0.0
        %479 = vmatprep.subr.mxu0 0.0
        %480 = vmatpush1.xpose.msra.mxu0 0.0
        %481 = vmatprep.subr.mxu0 0.0
        %482 = vmatpush1.xpose.msra.mxu0 0.0
        %483 = vmatprep.subr.mxu0 0.0
        %484 = vmatpush1.xpose.msra.mxu0 0.0
        %485 = vmatprep.subr.mxu0 0.0
        %486 = vmatpush1.xpose.msra.mxu0 0.0
        %487 = vmatprep.subr.mxu0 0.0
        %488 = vmatpush1.xpose.msra.mxu0 0.0
        %489 = vmatprep.subr.mxu0 0.0
        %490 = vmatpush1.xpose.msra.mxu0 0.0
        %491 = vmatprep.subr.mxu0 0.0
        %492 = vmatpush1.xpose.msra.mxu0 0.0
        %493 = vmatprep.subr.mxu0 0.0
        %494 = vmatpush1.xpose.msra.mxu0 0.0
        %495 = vmatprep.subr.mxu0 0.0
        %496 = vmatpush1.xpose.msra.mxu0 0.0
        %497 = vmatprep.subr.mxu0 0.0
        %498 = vmatpush1.xpose.msra.mxu0 0.0
        %499 = vmatprep.subr.mxu0 0.0
        %500 = vmatpush1.xpose.msra.mxu0 0.0
        %501 = vmatprep.subr.mxu0 0.0
        %502 = vmatpush1.xpose.msra.mxu0 0.0
        %503 = vmatprep.subr.mxu0 0.0
        %504 = vmatpush1.xpose.msra.mxu0 0.0
        %505 = vmatprep.subr.mxu0 0.0
        %506 = vmatpush1.xpose.msra.mxu0 0.0
        %507 = vmatprep.subr.mxu0 0.0
        %508 = vmatpush1.xpose.msra.mxu0 0.0
        %509 = vmatprep.subr.mxu0 0.0
        %510 = vmatpush1.xpose.msra.mxu0 0.0
        %511 = vmatprep.subr.mxu0 0.0
        %512 = vmatpush1.xpose.msra.mxu0 0.0
        %513 = vmatprep.subr.mxu0 0.0
        %514 = vmatpush1.xpose.msra.mxu0 0.0
        %515 = vmatprep.mubr.f32.mxu0 0.0
        %516 = vmatmul.mubr.f32.gmra.mrb[0].mxu0 %v447
        %v517 = vpop.f32.mrb[0].mxu0
        %v518 = vadd.f32 0.0, %v517
        %v519 = vpop.f32.mrb[0].mxu0
        %520 = vdwg.mxu0
        %v521 = vsel %vm354, %v518, -inf
        %522 = vmax.xlane.f32.xlu0 %v521
        %v523 = vpop.xlane.xlu0 %522
        %v524 = vsub.f32 %v518, %v523
        %v525 = vmul.f32 %v524, 1.442695
        %v526 = vpow.pop %v525
        %v527 = vsel %vm354, %v526, 0.0
        %528 = vadd.xlane.f32.xlu0 %v527
        %v529 = vpop.xlane.xlu0 %528
        %530 = vrot.lane.b32.xlu0 %v276, 120
        %v531 = vpop.permute.xlu0 %530
        %v533 = vsel %vm354, %v526, 0
        %v535 = vsel %vm367, %v531, 0
        %537 = vmatprep.subr.mxu0 0.0
        %538 = vmatpush1.msra.mxu0 %v535
        %539 = vmatprep.subr.mxu0 0.0
        %540 = vmatpush1.msra.mxu0 0.0
        %541 = vmatprep.subr.mxu0 0.0
        %542 = vmatpush1.msra.mxu0 0.0
        %543 = vmatprep.subr.mxu0 0.0
        %544 = vmatpush1.msra.mxu0 0.0
        %545 = vmatprep.subr.mxu0 0.0
        %546 = vmatpush1.msra.mxu0 0.0
        %547 = vmatprep.subr.mxu0 0.0
        %548 = vmatpush1.msra.mxu0 0.0
        %549 = vmatprep.subr.mxu0 0.0
        %550 = vmatpush1.msra.mxu0 0.0
        %551 = vmatprep.subr.mxu0 0.0
        %552 = vmatpush1.msra.mxu0 0.0
        %553 = vmatprep.subr.mxu0 0.0
        %554 = vmatpush1.msra.mxu0 0.0
        %555 = vmatprep.subr.mxu0 0.0
        %556 = vmatpush1.msra.mxu0 0.0
        %557 = vmatprep.subr.mxu0 0.0
        %558 = vmatpush1.msra.mxu0 0.0
        %559 = vmatprep.subr.mxu0 0.0
        %560 = vmatpush1.msra.mxu0 0.0
        %561 = vmatprep.subr.mxu0 0.0
        %562 = vmatpush1.msra.mxu0 0.0
        %563 = vmatprep.subr.mxu0 0.0
        %564 = vmatpush1.msra.mxu0 0.0
        %565 = vmatprep.subr.mxu0 0.0
        %566 = vmatpush1.msra.mxu0 0.0
        %567 = vmatprep.subr.mxu0 0.0
        %568 = vmatpush1.msra.mxu0 0.0
        %569 = vmatprep.subr.mxu0 0.0
        %570 = vmatpush1.msra.mxu0 0.0
        %571 = vmatprep.subr.mxu0 0.0
        %572 = vmatpush1.msra.mxu0 0.0
        %573 = vmatprep.subr.mxu0 0.0
        %574 = vmatpush1.msra.mxu0 0.0
        %575 = vmatprep.subr.mxu0 0.0
        %576 = vmatpush1.msra.mxu0 0.0
        %577 = vmatprep.subr.mxu0 0.0
        %578 = vmatpush1.msra.mxu0 0.0
        %579 = vmatprep.subr.mxu0 0.0
        %580 = vmatpush1.msra.mxu0 0.0
        %581 = vmatprep.subr.mxu0 0.0
        %582 = vmatpush1.msra.mxu0 0.0
        %583 = vmatprep.subr.mxu0 0.0
        %584 = vmatpush1.msra.mxu0 0.0
        %585 = vmatprep.subr.mxu0 0.0
        %586 = vmatpush1.msra.mxu0 0.0
        %587 = vmatprep.subr.mxu0 0.0
        %588 = vmatpush1.msra.mxu0 0.0
        %589 = vmatprep.subr.mxu0 0.0
        %590 = vmatpush1.msra.mxu0 0.0
        %591 = vmatprep.subr.mxu0 0.0
        %592 = vmatpush1.msra.mxu0 0.0
        %593 = vmatprep.subr.mxu0 0.0
        %594 = vmatpush1.msra.mxu0 0.0
        %595 = vmatprep.subr.mxu0 0.0
        %596 = vmatpush1.msra.mxu0 0.0
        %597 = vmatprep.subr.mxu0 0.0
        %598 = vmatpush1.msra.mxu0 0.0
        %599 = vmatprep.subr.mxu0 0.0
        %600 = vmatpush1.msra.mxu0 0.0
        %601 = vmatprep.mubr.f32.mxu0 0.0
        %602 = vmatmul.mubr.f32.gmra.mrb[0].mxu0 %v533
        %v603 = vpop.f32.mrb[0].mxu0
        %v604 = vadd.f32 0.0, %v603
        %v605 = vpop.f32.mrb[0].mxu0
        %606 = vdwg.mxu0
        %v607 = vrcp.pop %v529
        %v608 = vmul.f32 %v604, %v607
        %609 = vrot.lane.b32.xlu0 %v274, 112
        %v610 = vpop.permute.xlu0 %609
        %611 = vrot.lane.b32.xlu0 %v275, 112
        %v612 = vpop.permute.xlu0 %611
        %v613 = vsel %vm277, %v610, 0
        %v615 = vsel %vm277, %v612, 0
        %617 = vmatprep.subr.mxu0 0.0
        %618 = vmatpush1.xpose.msra.mxu0 %v615
        %619 = vmatprep.subr.mxu0 0.0
        %620 = vmatpush1.xpose.msra.mxu0 0.0
        %621 = vmatprep.subr.mxu0 0.0
        %622 = vmatpush1.xpose.msra.mxu0 0.0
        %623 = vmatprep.subr.mxu0 0.0
        %624 = vmatpush1.xpose.msra.mxu0 0.0
        %625 = vmatprep.subr.mxu0 0.0
        %626 = vmatpush1.xpose.msra.mxu0 0.0
        %627 = vmatprep.subr.mxu0 0.0
        %628 = vmatpush1.xpose.msra.mxu0 0.0
        %629 = vmatprep.subr.mxu0 0.0
        %630 = vmatpush1.xpose.msra.mxu0 0.0
        %631 = vmatprep.subr.mxu0 0.0
        %632 = vmatpush1.xpose.msra.mxu0 0.0
        %633 = vmatprep.subr.mxu0 0.0
        %634 = vmatpush1.xpose.msra.mxu0 0.0
        %635 = vmatprep.subr.mxu0 0.0
        %636 = vmatpush1.xpose.msra.mxu0 0.0
        %637 = vmatprep.subr.mxu0 0.0
        %638 = vmatpush1.xpose.msra.mxu0 0.0
        %639 = vmatprep.subr.mxu0 0.0
        %640 = vmatpush1.xpose.msra.mxu0 0.0
        %641 = vmatprep.subr.mxu0 0.0
        %642 = vmatpush1.xpose.msra.mxu0 0.0
        %643 = vmatprep.subr.mxu0 0.0
        %644 = vmatpush1.xpose.msra.mxu0 0.0
        %645 = vmatprep.subr.mxu0 0.0
        %646 = vmatpush1.xpose.msra.mxu0 0.0
        %647 = vmatprep.subr.mxu0 0.0
        %648 = vmatpush1.xpose.msra.mxu0 0.0
        %649 = vmatprep.subr.mxu0 0.0
        %650 = vmatpush1.xpose.msra.mxu0 0.0
        %651 = vmatprep.subr.mxu0 0.0
        %652 = vmatpush1.xpose.msra.mxu0 0.0
        %653 = vmatprep.subr.mxu0 0.0
        %654 = vmatpush1.xpose.msra.mxu0 0.0
        %655 = vmatprep.subr.mxu0 0.0
        %656 = vmatpush1.xpose.msra.mxu0 0.0
        %657 = vmatprep.subr.mxu0 0.0
        %658 = vmatpush1.xpose.msra.mxu0 0.0
        %659 = vmatprep.subr.mxu0 0.0
        %660 = vmatpush1.xpose.msra.mxu0 0.0
        %661 = vmatprep.subr.mxu0 0.0
        %662 = vmatpush1.xpose.msra.mxu0 0.0
        %663 = vmatprep.subr.mxu0 0.0
        %664 = vmatpush1.xpose.msra.mxu0 0.0
        %665 = vmatprep.subr.mxu0 0.0
        %666 = vmatpush1.xpose.msra.mxu0 0.0
        %667 = vmatprep.subr.mxu0 0.0
        %668 = vmatpush1.xpose.msra.mxu0 0.0
        %669 = vmatprep.subr.mxu0 0.0
        %670 = vmatpush1.xpose.msra.mxu0 0.0
        %671 = vmatprep.subr.mxu0 0.0
        %672 = vmatpush1.xpose.msra.mxu0 0.0
        %673 = vmatprep.subr.mxu0 0.0
        %674 = vmatpush1.xpose.msra.mxu0 0.0
        %675 = vmatprep.subr.mxu0 0.0
        %676 = vmatpush1.xpose.msra.mxu0 0.0
        %677 = vmatprep.subr.mxu0 0.0
        %678 = vmatpush1.xpose.msra.mxu0 0.0
        %679 = vmatprep.subr.mxu0 0.0
        %680 = vmatpush1.xpose.msra.mxu0 0.0
        %681 = vmatprep.mubr.f32.mxu0 0.0
        %682 = vmatmul.mubr.f32.gmra.mrb[0].mxu0 %v613
        %v683 = vpop.f32.mrb[0].mxu0
        %v684 = vadd.f32 0.0, %v683
        %v685 = vpop.f32.mrb[0].mxu0
        %686 = vdwg.mxu0
        %v687 = vsel %vm354, %v684, -inf
        %688 = vmax.xlane.f32.xlu0 %v687
        %v689 = vpop.xlane.xlu0 %688
        %v690 = vsub.f32 %v684, %v689
        %v691 = vmul.f32 %v690, 1.442695
        %v692 = vpow.pop %v691
        %v693 = vsel %vm354, %v692, 0.0
        %694 = vadd.xlane.f32.xlu0 %v693
        %v695 = vpop.xlane.xlu0 %694
        %696 = vrot.lane.b32.xlu0 %v276, 112
        %v697 = vpop.permute.xlu0 %696
        %v699 = vsel %vm354, %v692, 0
        %v701 = vsel %vm367, %v697, 0
        %703 = vmatprep.subr.mxu0 0.0
        %704 = vmatpush1.msra.mxu0 %v701
        %705 = vmatprep.subr.mxu0 0.0
        %706 = vmatpush1.msra.mxu0 0.0
        %707 = vmatprep.subr.mxu0 0.0
        %708 = vmatpush1.msra.mxu0 0.0
        %709 = vmatprep.subr.mxu0 0.0
        %710 = vmatpush1.msra.mxu0 0.0
        %711 = vmatprep.subr.mxu0 0.0
        %712 = vmatpush1.msra.mxu0 0.0
        %713 = vmatprep.subr.mxu0 0.0
        %714 = vmatpush1.msra.mxu0 0.0
        %715 = vmatprep.subr.mxu0 0.0
        %716 = vmatpush1.msra.mxu0 0.0
        %717 = vmatprep.subr.mxu0 0.0
        %718 = vmatpush1.msra.mxu0 0.0
        %719 = vmatprep.subr.mxu0 0.0
        %720 = vmatpush1.msra.mxu0 0.0
        %721 = vmatprep.subr.mxu0 0.0
        %722 = vmatpush1.msra.mxu0 0.0
        %723 = vmatprep.subr.mxu0 0.0
        %724 = vmatpush1.msra.mxu0 0.0
        %725 = vmatprep.subr.mxu0 0.0
        %726 = vmatpush1.msra.mxu0 0.0
        %727 = vmatprep.subr.mxu0 0.0
        %728 = vmatpush1.msra.mxu0 0.0
        %729 = vmatprep.subr.mxu0 0.0
        %730 = vmatpush1.msra.mxu0 0.0
        %731 = vmatprep.subr.mxu0 0.0
        %732 = vmatpush1.msra.mxu0 0.0
        %733 = vmatprep.subr.mxu0 0.0
        %734 = vmatpush1.msra.mxu0 0.0
        %735 = vmatprep.subr.mxu0 0.0
        %736 = vmatpush1.msra.mxu0 0.0
        %737 = vmatprep.subr.mxu0 0.0
        %738 = vmatpush1.msra.mxu0 0.0
        %739 = vmatprep.subr.mxu0 0.0
        %740 = vmatpush1.msra.mxu0 0.0
        %741 = vmatprep.subr.mxu0 0.0
        %742 = vmatpush1.msra.mxu0 0.0
        %743 = vmatprep.subr.mxu0 0.0
        %744 = vmatpush1.msra.mxu0 0.0
        %745 = vmatprep.subr.mxu0 0.0
        %746 = vmatpush1.msra.mxu0 0.0
        %747 = vmatprep.subr.mxu0 0.0
        %748 = vmatpush1.msra.mxu0 0.0
        %749 = vmatprep.subr.mxu0 0.0
        %750 = vmatpush1.msra.mxu0 0.0
        %751 = vmatprep.subr.mxu0 0.0
        %752 = vmatpush1.msra.mxu0 0.0
        %753 = vmatprep.subr.mxu0 0.0
        %754 = vmatpush1.msra.mxu0 0.0
        %755 = vmatprep.subr.mxu0 0.0
        %756 = vmatpush1.msra.mxu0 0.0
        %757 = vmatprep.subr.mxu0 0.0
        %758 = vmatpush1.msra.mxu0 0.0
        %759 = vmatprep.subr.mxu0 0.0
        %760 = vmatpush1.msra.mxu0 0.0
        %761 = vmatprep.subr.mxu0 0.0
        %762 = vmatpush1.msra.mxu0 0.0
        %763 = vmatprep.subr.mxu0 0.0
        %764 = vmatpush1.msra.mxu0 0.0
        %765 = vmatprep.subr.mxu0 0.0
        %766 = vmatpush1.msra.mxu0 0.0
        %767 = vmatprep.mubr.f32.mxu0 0.0
        %768 = vmatmul.mubr.f32.gmra.mrb[0].mxu0 %v699
        %v769 = vpop.f32.mrb[0].mxu0
        %v770 = vadd.f32 0.0, %v769
        %v771 = vpop.f32.mrb[0].mxu0
        %772 = vdwg.mxu0
        %v773 = vrcp.pop %v695
        %v774 = vmul.f32 %v770, %v773
        %775 = vrot.lane.b32.xlu0 %v274, 104
        %v776 = vpop.permute.xlu0 %775
        %777 = vrot.lane.b32.xlu0 %v275, 104
        %v778 = vpop.permute.xlu0 %777
        %v779 = vsel %vm277, %v776, 0
        %v781 = vsel %vm277, %v778, 0
        %783 = vmatprep.subr.mxu0 0.0
        %784 = vmatpush1.xpose.msra.mxu0 %v781
        %785 = vmatprep.subr.mxu0 0.0
        %786 = vmatpush1.xpose.msra.mxu0 0.0
        %787 = vmatprep.subr.mxu0 0.0
        %788 = vmatpush1.xpose.msra.mxu0 0.0
        %789 = vmatprep.subr.mxu0 0.0
        %790 = vmatpush1.xpose.msra.mxu0 0.0
        %791 = vmatprep.subr.mxu0 0.0
        %792 = vmatpush1.xpose.msra.mxu0 0.0
        %793 = vmatprep.subr.mxu0 0.0
        %794 = vmatpush1.xpose.msra.mxu0 0.0
        %795 = vmatprep.subr.mxu0 0.0
        %796 = vmatpush1.xpose.msra.mxu0 0.0
        %797 = vmatprep.subr.mxu0 0.0
        %798 = vmatpush1.xpose.msra.mxu0 0.0
        %799 = vmatprep.subr.mxu0 0.0
        %800 = vmatpush1.xpose.msra.mxu0 0.0
        %801 = vmatprep.subr.mxu0 0.0
        %802 = vmatpush1.xpose.msra.mxu0 0.0
        %803 = vmatprep.subr.mxu0 0.0
        %804 = vmatpush1.xpose.msra.mxu0 0.0
        %805 = vmatprep.subr.mxu0 0.0
        %806 = vmatpush1.xpose.msra.mxu0 0.0
        %807 = vmatprep.subr.mxu0 0.0
        %808 = vmatpush1.xpose.msra.mxu0 0.0
        %809 = vmatprep.subr.mxu0 0.0
        %810 = vmatpush1.xpose.msra.mxu0 0.0
        %811 = vmatprep.subr.mxu0 0.0
        %812 = vmatpush1.xpose.msra.mxu0 0.0
        %813 = vmatprep.subr.mxu0 0.0
        %814 = vmatpush1.xpose.msra.mxu0 0.0
        %815 = vmatprep.subr.mxu0 0.0
        %816 = vmatpush1.xpose.msra.mxu0 0.0
        %817 = vmatprep.subr.mxu0 0.0
        %818 = vmatpush1.xpose.msra.mxu0 0.0
        %819 = vmatprep.subr.mxu0 0.0
        %820 = vmatpush1.xpose.msra.mxu0 0.0
        %821 = vmatprep.subr.mxu0 0.0
        %822 = vmatpush1.xpose.msra.mxu0 0.0
        %823 = vmatprep.subr.mxu0 0.0
        %824 = vmatpush1.xpose.msra.mxu0 0.0
        %825 = vmatprep.subr.mxu0 0.0
        %826 = vmatpush1.xpose.msra.mxu0 0.0
        %827 = vmatprep.subr.mxu0 0.0
        %828 = vmatpush1.xpose.msra.mxu0 0.0
        %829 = vmatprep.subr.mxu0 0.0
        %830 = vmatpush1.xpose.msra.mxu0 0.0
        %831 = vmatprep.subr.mxu0 0.0
        %832 = vmatpush1.xpose.msra.mxu0 0.0
        %833 = vmatprep.subr.mxu0 0.0
        %834 = vmatpush1.xpose.msra.mxu0 0.0
        %835 = vmatprep.subr.mxu0 0.0
        %836 = vmatpush1.xpose.msra.mxu0 0.0
        %837 = vmatprep.subr.mxu0 0.0
        %838 = vmatpush1.xpose.msra.mxu0 0.0
        %839 = vmatprep.subr.mxu0 0.0
        %840 = vmatpush1.xpose.msra.mxu0 0.0
        %841 = vmatprep.subr.mxu0 0.0
        %842 = vmatpush1.xpose.msra.mxu0 0.0
        %843 = vmatprep.subr.mxu0 0.0
        %844 = vmatpush1.xpose.msra.mxu0 0.0
        %845 = vmatprep.subr.mxu0 0.0
        %846 = vmatpush1.xpose.msra.mxu0 0.0
        %847 = vmatprep.mubr.f32.mxu0 0.0
        %848 = vmatmul.mubr.f32.gmra.mrb[0].mxu0 %v779
        %v849 = vpop.f32.mrb[0].mxu0
        %v850 = vadd.f32 0.0, %v849
        %v851 = vpop.f32.mrb[0].mxu0
        %852 = vdwg.mxu0
        %v853 = vsel %vm354, %v850, -inf
        %854 = vmax.xlane.f32.xlu0 %v853
        %v855 = vpop.xlane.xlu0 %854
        %v856 = vsub.f32 %v850, %v855
        %v857 = vmul.f32 %v856, 1.442695
        %v858 = vpow.pop %v857
        %v859 = vsel %vm354, %v858, 0.0
        %860 = vadd.xlane.f32.xlu0 %v859
        %v861 = vpop.xlane.xlu0 %860
        %862 = vrot.lane.b32.xlu0 %v276, 104
        %v863 = vpop.permute.xlu0 %862
        %v865 = vsel %vm354, %v858, 0
        %v867 = vsel %vm367, %v863, 0
        %869 = vmatprep.subr.mxu0 0.0
        %870 = vmatpush1.msra.mxu0 %v867
        %871 = vmatprep.subr.mxu0 0.0
        %872 = vmatpush1.msra.mxu0 0.0
        %873 = vmatprep.subr.mxu0 0.0
        %874 = vmatpush1.msra.mxu0 0.0
        %875 = vmatprep.subr.mxu0 0.0
        %876 = vmatpush1.msra.mxu0 0.0
        %877 = vmatprep.subr.mxu0 0.0
        %878 = vmatpush1.msra.mxu0 0.0
        %879 = vmatprep.subr.mxu0 0.0
        %880 = vmatpush1.msra.mxu0 0.0
        %881 = vmatprep.subr.mxu0 0.0
        %882 = vmatpush1.msra.mxu0 0.0
        %883 = vmatprep.subr.mxu0 0.0
        %884 = vmatpush1.msra.mxu0 0.0
        %885 = vmatprep.subr.mxu0 0.0
        %886 = vmatpush1.msra.mxu0 0.0
        %887 = vmatprep.subr.mxu0 0.0
        %888 = vmatpush1.msra.mxu0 0.0
        %889 = vmatprep.subr.mxu0 0.0
        %890 = vmatpush1.msra.mxu0 0.0
        %891 = vmatprep.subr.mxu0 0.0
        %892 = vmatpush1.msra.mxu0 0.0
        %893 = vmatprep.subr.mxu0 0.0
        %894 = vmatpush1.msra.mxu0 0.0
        %895 = vmatprep.subr.mxu0 0.0
        %896 = vmatpush1.msra.mxu0 0.0
        %897 = vmatprep.subr.mxu0 0.0
        %898 = vmatpush1.msra.mxu0 0.0
        %899 = vmatprep.subr.mxu0 0.0
        %900 = vmatpush1.msra.mxu0 0.0
        %901 = vmatprep.subr.mxu0 0.0
        %902 = vmatpush1.msra.mxu0 0.0
        %903 = vmatprep.subr.mxu0 0.0
        %904 = vmatpush1.msra.mxu0 0.0
        %905 = vmatprep.subr.mxu0 0.0
        %906 = vmatpush1.msra.mxu0 0.0
        %907 = vmatprep.subr.mxu0 0.0
        %908 = vmatpush1.msra.mxu0 0.0
        %909 = vmatprep.subr.mxu0 0.0
        %910 = vmatpush1.msra.mxu0 0.0
        %911 = vmatprep.subr.mxu0 0.0
        %912 = vmatpush1.msra.mxu0 0.0
        %913 = vmatprep.subr.mxu0 0.0
        %914 = vmatpush1.msra.mxu0 0.0
        %915 = vmatprep.subr.mxu0 0.0
        %916 = vmatpush1.msra.mxu0 0.0
        %917 = vmatprep.subr.mxu0 0.0
        %918 = vmatpush1.msra.mxu0 0.0
        %919 = vmatprep.subr.mxu0 0.0
        %920 = vmatpush1.msra.mxu0 0.0
        %921 = vmatprep.subr.mxu0 0.0
        %922 = vmatpush1.msra.mxu0 0.0
        %923 = vmatprep.subr.mxu0 0.0
        %924 = vmatpush1.msra.mxu0 0.0
        %925 = vmatprep.subr.mxu0 0.0
        %926 = vmatpush1.msra.mxu0 0.0
        %927 = vmatprep.subr.mxu0 0.0
        %928 = vmatpush1.msra.mxu0 0.0
        %929 = vmatprep.subr.mxu0 0.0
        %930 = vmatpush1.msra.mxu0 0.0
        %931 = vmatprep.subr.mxu0 0.0
        %932 = vmatpush1.msra.mxu0 0.0
        %933 = vmatprep.mubr.f32.mxu0 0.0
        %934 = vmatmul.mubr.f32.gmra.mrb[0].mxu0 %v865
        %v935 = vpop.f32.mrb[0].mxu0
        %v936 = vadd.f32 0.0, %v935
        %v937 = vpop.f32.mrb[0].mxu0
        %938 = vdwg.mxu0
        %v939 = vrcp.pop %v861
        %v940 = vmul.f32 %v936, %v939
        %942 = vrot.lane.b32.xlu0 %v608, 8
        %v943 = vpop.permute.xlu0 %942
        %946 = vrot.lane.b32.xlu0 %v774, 16
        %v947 = vpop.permute.xlu0 %946
        %950 = vrot.lane.b32.xlu0 %v940, 24
        %v951 = vpop.permute.xlu0 %950
        %v953 = vsel %vm277, %v442, %v943
        %vm954 = vcmask 130048
        %v955 = vsel %vm954, %v953, %v947
        %vm956 = vcmask 195584
        %v957 = vsel %vm956, %v955, %v951
        %vm958 = vcmask 261120
        %959 = vst.msk [vmem:[%s273] sm:$0xff] %vm958, %v957
        %s960 = sand.u32 %s125, 1
        %s961 = scalar_lea.sflag [#allocation4], %s960
        %s962 = sand.u32 %s125, 1
        %s963 = smul.addr %s962, 8
        %s964 = scalar_lea.vmem [#allocation8], %s963
        // Predicated region
        $region45: #{tpu_custom_call.1} parent=31 // pred_check
          %p965 = pneg %p135
        $region46: #{tpu_custom_call.1} parent=31 // pred_check_branch
          %967 = sbr.rel (%p965) target = $region48
        $region47: #{tpu_custom_call.1} parent=31 // pred_region
          %s969 = ssub.s32 128, 128
          %970 = vsyncadd %s961, %s969
          %s971 = sadd.s32 %s28, %s27
          %s972 = smul.addr %s971, 128
          %s973 = scalar_lea.hbm %s3, %s972
          %s975 = sshll.u32 %s964, 4
          %s976 = int_to_ptr.vmem [resolvable:$true] %s975
          %978 = dma.vmem_to_hbm [thread:$0]  %s976, 128, %s973, %s961
        $region48: #{tpu_custom_call.1} parent=31 // pred_fallthru
          _
      $region32: #{tpu_custom_call.1} parent=5 // pred_fallthru
        _
      %p979 = scmp.le.s32.totalorder 2, %s18
      // Predicated region
      $region49: #{tpu_custom_call.1} parent=5 // pred_check
        %p980 = pneg %p979
      $region50: #{tpu_custom_call.1} parent=5 // pred_check_branch
        %982 = sbr.rel (%p980) target = $region52
      $region51: #{tpu_custom_call.1} parent=5 // pred_region
        %s983 = ssub.s32 %s18, 2
        // Predicated region
        $region53: #{tpu_custom_call.1} parent=51 // pred_check
          %p984 = pneg %p141
        $region54: #{tpu_custom_call.1} parent=51 // pred_check_branch
          %986 = sbr.rel (%p984) target = $region56
        $region55: #{tpu_custom_call.1} parent=51 // pred_region
          %s987 = sand.u32 %s126, 1
          %s988 = scalar_lea.sflag [#allocation4], %s987
          %s989 = sand.u32 %s126, 1
          %s990 = smul.addr %s989, 8
          %s991 = scalar_lea.vmem [#allocation8], %s990
          %992 = dma.done %s988, 128
        $region56: #{tpu_custom_call.1} parent=51 // pred_fallthru
          _
      $region52: #{tpu_custom_call.1} parent=5 // pred_fallthru
        _
    $region6: #{tpu_custom_call.1} parent=1 // loop_footer
      %s22 = sadd.s32 1, %s18
    $region7: #{tpu_custom_call.1} parent=1 // loop_footer_branch
      %17 = sbr.rel target = $region3
    $region8: #{tpu_custom_call.1} parent=1 // loop_exit
      _
    %993 = vsyncpa [#allocation3], 1
    %s994 = scalar_lea.sflag [#allocation3], 1
    %995 = vsyncpa %s994, 1
    %996 = vsyncpa [#allocation6], 1
    %s997 = scalar_lea.sflag [#allocation6], 1
    %998 = vsyncpa %s997, 1
    %999 = vsyncpa [#allocation4], 1
    %s1000 = scalar_lea.sflag [#allocation4], 1
    %1001 = vsyncpa %s1000, 1

</llo_original>
